<compile_context>
chip_gen: v5e
topology: v5e:2x2
jax: 0.10.0
libtpu: 0.0.40
codegen_flags: <defaults>
</compile_context>

<pallas_src>
import functools

import numpy as np
import jax
import jax.numpy as jnp
from jax.experimental import pallas as pl
from jax.experimental.pallas import tpu as pltpu


def _round_up(x: int, m: int) -> int:
    return ((x + m - 1) // m) * m


def _sublane(itemsize: int) -> int:
    # sublane packing: f32 -> 8, bf16 -> 16, int8/fp8 -> 32
    return max(8, 32 // max(int(itemsize), 1))


def _choose_group(n_total: int, row_bytes: int, itemsize: int, vmem_copies: int) -> int:
    """Rows handled per grid step.

    Multiple of the dtype's sublane packing; sized so that `vmem_copies`
    resident copies of a (G, F_pad) block (pipeline double-buffers for
    input/output) stay under ~8 MiB.
    """
    sub = _sublane(itemsize)
    g = min(64, _round_up(max(n_total, 1), sub))
    budget = 8 * 1024 * 1024
    while g > sub and vmem_copies * g * row_bytes > budget:
        g -= sub
    return max(g, sub)


def _vmem_limit(usage_bytes: int) -> int:
    # usage + headroom, clamped to [16 MiB, 32 MiB] (safe on v5e/v6e/v7x).
    return int(min(32 * 1024 * 1024, max(16 * 1024 * 1024, usage_bytes + 8 * 1024 * 1024)))


# ----------------------------------------------------------------------------
# mode="disc": data-dependent row gather.
#   patches_hbm : (n_pad, F_pad) in HBM (memory_space=pl.ANY)
#   src_ref     : (n_pad,) int32 in SMEM (scalar prefetch), n_pad % G == 0
#   out         : (n_pad, F_pad), out[n] = patches[src[n]]
# Each grid step DMAs its G rows straight into its output block (no VMEM
# bounce buffer, no vreg copy) and waits once on an aggregate descriptor.
# ----------------------------------------------------------------------------
def _make_disc_kernel(G):
    def kernel(src_ref, patches_hbm, out_ref, sem):
        n = pl.program_id(0)
        base = n * G
        # Issue G row-gather DMAs (HBM row src[base+g] -> output row g).
        for g in range(G):  # static unroll
            pltpu.make_async_copy(
                patches_hbm.at[pl.ds(src_ref[base + g], 1)],
                out_ref.at[pl.ds(g, 1)],
                sem,
            ).start()
        # ONE aggregate wait: the stand-in descriptor's byte count
        # (G * F_pad * itemsize) equals the sum of the G row copies started
        # above, all of which signal the same scalar DMA semaphore.
        # NOTE: fragile by construction — must be kept in sync with the row
        # shape / semaphore sharing above.
        pltpu.make_async_copy(
            patches_hbm.at[pl.ds(0, G)],
            out_ref,
            sem,
        ).wait()

    return kernel


def _run_disc_gather(patches, src, G):
    n_pad, F_pad = patches.shape
    itemsize = patches.dtype.itemsize
    assert n_pad % G == 0 and F_pad % 128 == 0
    assert G % _sublane(itemsize) == 0 and n_pad >= G

    usage = 2 * G * F_pad * itemsize  # pipeline output double-buffer only
    grid_spec = pltpu.PrefetchScalarGridSpec(
        num_scalar_prefetch=1,
        grid=(n_pad // G,),
        in_specs=[pl.BlockSpec(memory_space=pl.ANY)],
        out_specs=pl.BlockSpec((G, F_pad), lambda n, s: (n, 0)),
        scratch_shapes=[pltpu.SemaphoreType.DMA(())],
    )
    return pl.pallas_call(
        _make_disc_kernel(G),
        out_shape=jax.ShapeDtypeStruct((n_pad, F_pad), patches.dtype),
        grid_spec=grid_spec,
        compiler_params=pltpu.CompilerParams(
            # Steps are self-contained -> safe to shard across v7x's two TCs.
            dimension_semantics=("parallel",),
            vmem_limit_bytes=_vmem_limit(usage),
        ),
        cost_estimate=pl.CostEstimate(
            flops=0,
            transcendentals=0,
            bytes_accessed=2 * n_pad * F_pad * itemsize,
        ),
    )(src, patches)


# ----------------------------------------------------------------------------
# mode="mask": identity layout + per-row select of a resident random patch.
# Pure auto-pipelined elementwise kernel (no manual DMA machinery).
# ----------------------------------------------------------------------------
def _mask_kernel(patch_ref, rand_ref, flag_ref, out_ref):
    flag = flag_ref[:, :1] > 0.0                      # (G, 1)
    out_ref[...] = jnp.where(flag, rand_ref[...], patch_ref[...])


def _run_mask(patches, rand_row, flags, G):
    n_pad, F_pad = patches.shape
    itemsize = patches.dtype.itemsize
    assert n_pad % G == 0 and F_pad % 128 == 0
    assert G % _sublane(itemsize) == 0
    assert flags.shape == (n_pad, 128)

    usage = (2 * G * F_pad * itemsize) * 2 + 2 * F_pad * itemsize + 2 * G * 128 * 4
    return pl.pallas_call(
        _mask_kernel,
        out_shape=jax.ShapeDtypeStruct((n_pad, F_pad), patches.dtype),
        grid=(n_pad // G,),
        in_specs=[
            pl.BlockSpec((G, F_pad), lambda n: (n, 0)),    # patch rows
            pl.BlockSpec((1, F_pad), lambda n: (0, 0)),    # resident random patch
            pl.BlockSpec((G, 128), lambda n: (n, 0)),      # lane-dense flags
        ],
        out_specs=pl.BlockSpec((G, F_pad), lambda n: (n, 0)),
        compiler_params=pltpu.CompilerParams(
            dimension_semantics=("parallel",),
            vmem_limit_bytes=_vmem_limit(usage),
        ),
        cost_estimate=pl.CostEstimate(
            flops=0,
            transcendentals=0,
            bytes_accessed=2 * n_pad * F_pad * itemsize + n_pad * 128 * 4,
        ),
    )(patches, rand_row, flags)


# ----------------------------------------------------------------------------
# Patch <-> row layout plumbing (XLA) and jitted device path.
# ----------------------------------------------------------------------------
def _patchify(image, P):
    B, C, H, W = image.shape
    nH, nW = H // P, W // P
    x = image.reshape(B, C, nH, P, nW, P)
    x = jnp.transpose(x, (0, 2, 4, 1, 3, 5)).reshape(B * nH * nW, C * P * P)
    return x


def _unpatchify(rows, B, C, H, W, P):
    nH, nW = H // P, W // P
    x = rows.reshape(B, nH, nW, C, P, P)
    return jnp.transpose(x, (0, 3, 1, 4, 2, 5)).reshape(B, C, H, W)


@functools.partial(jax.jit, static_argnames=("patch_size", "mode", "group"))
def _corrupt_device(image, src, flags, rand_row, *, patch_size, mode, group):
    B, C, H, W = image.shape
    P = patch_size
    F = C * P * P
    F_pad = _round_up(F, 128)

    patches = _patchify(image, P)                       # (n_total, F)
    n_total = patches.shape[0]
    n_pad = _round_up(n_total, group)
    patches = jnp.pad(patches, ((0, n_pad - n_total), (0, F_pad - F)))

    if mode == "disc":
        rows = _run_disc_gather(patches, src, group)
    else:  # "mask"
        rand_pad = rand_row
        if F_pad != F:
            rand_pad = jnp.pad(rand_row, ((0, 0), (0, F_pad - F)))
        rows = _run_mask(patches, rand_pad, flags, group)

    rows = rows[:n_total, :F]
    return _unpatchify(rows, B, C, H, W, P)


# ----------------------------------------------------------------------------
# Host-side permutation plan (mirrors the reference's np.random logic,
# deterministic via seed).  Computed once per config and cached on-device.
# ----------------------------------------------------------------------------
@functools.lru_cache(maxsize=None)
def _make_plan(n_total, frac, seed, group):
    rng = np.random.RandomState(seed)
    idxs = np.arange(n_total)
    shuffled_idxs = idxs.copy()
    rng.shuffle(shuffled_idxs)
    shuffled_idxs = shuffled_idxs[: int(len(shuffled_idxs) * frac)]
    _shuffle_idxs = shuffled_idxs.copy()
    rng.shuffle(_shuffle_idxs)
    idxs[shuffled_idxs] = _shuffle_idxs                  # gather source map
    same = np.where(shuffled_idxs - _shuffle_idxs == 0)[0]
    list_same = shuffled_idxs[same]

    n_pad = _round_up(n_total, group)
    src_disc = np.zeros(n_pad, np.int32)
    src_disc[:n_total] = idxs
    flags = np.zeros((n_pad, 128), np.float32)           # lane-dense mask flags
    flags[shuffled_idxs, :] = 1.0

    mask_np = np.ones(n_total, np.float32)
    mask_np[shuffled_idxs] = 0.0
    mask_np[list_same] = 1.0

    return (shuffled_idxs, _shuffle_idxs,
            jnp.asarray(src_disc), jnp.asarray(flags), mask_np)


def corrupt_image(image, patch_size=32, frac=0.2, mode="disc",
                  return_proportion=False, rng_seed=0):
    if image.ndim != 4:
        # TODO(synk): the 5D single-channel volumetric path of the reference is not ported.
        raise ValueError("Only 4D NCHW tensors are supported in this Pallas port")
    if mode not in ("disc", "mask"):
        raise ValueError('Mode should be either "disc" or "mask"')

    B, C, H, W = image.shape
    P = patch_size
    nH, nW = H // P, W // P
    n_total = B * nH * nW
    n_patches = nH * nW
    F = C * P * P
    F_pad = _round_up(F, 128)
    itemsize = image.dtype.itemsize
    vmem_copies = 2 if mode == "disc" else 4             # double-buffered blocks resident
    group = _choose_group(n_total, F_pad * itemsize, itemsize, vmem_copies)

    (shuffled_idxs, _shuffle_idxs, src_disc, flags, mask_np) = _make_plan(
        n_total, float(frac), int(rng_seed), group)

    if mode == "disc":
        corrupted = _corrupt_device(image, src_disc, None, None,
                                    patch_size=P, mode=mode, group=group)
    else:
        key = jax.random.PRNGKey(rng_seed + 1)
        rand_row = jax.random.normal(key, (1, F), dtype=jnp.float32).astype(image.dtype)
        corrupted = _corrupt_device(image, None, flags, rand_row,
                                    patch_size=P, mode=mode, group=group)

    img_idxs = jnp.asarray(mask_np.reshape(B, 1, nH, nW))

    if return_proportion and mode == "disc":
        pos = np.repeat(np.arange(B), n_patches)
        tgt_img = pos[shuffled_idxs]
        src_img = pos[_shuffle_idxs]
        counts = np.zeros((B, B), dtype=np.float64)
        np.add.at(counts, (tgt_img, src_img), 1.0)
        unique = counts / n_patches
        np.fill_diagonal(unique, 0.0)
        unique = unique + np.diag(1.0 - unique.sum(axis=1))
        return corrupted, jnp.asarray(unique, dtype=jnp.float32)

    return corrupted, img_idxs


class CorruptImage:
    """JAX/Pallas port of the PyTorch CorruptImage module."""

    def __init__(self, patch_size=32, frac=0.2, mode="disc", return_proportion=False):
        self.patch_size = patch_size
        self.frac = frac
        self.mode = mode
        self.return_proportion = return_proportion

    def __call__(self, image, rng_seed=0):
        return corrupt_image(image, self.patch_size, self.frac, self.mode,
                             self.return_proportion, rng_seed=rng_seed)


# ----------------------------------------------------------------------------
# Self-test
# ----------------------------------------------------------------------------
def _np_plan(n_total, frac, seed):
    rng = np.random.RandomState(seed)
    idxs = np.arange(n_total)
    shuffled = idxs.copy()
    rng.shuffle(shuffled)
    shuffled = shuffled[: int(len(shuffled) * frac)]
    _shuf = shuffled.copy()
    rng.shuffle(_shuf)
    idxs[shuffled] = _shuf
    return idxs, shuffled


def _np_patchify(x_np, P):
    B, C, H, W = x_np.shape
    nH, nW = H // P, W // P
    return x_np.reshape(B, C, nH, P, nW, P).transpose(0, 2, 4, 1, 3, 5).reshape(
        B * nH * nW, C * P * P)


def _np_unpatchify(rows, B, C, H, W, P):
    nH, nW = H // P, W // P
    return rows.reshape(B, nH, nW, C, P, P).transpose(0, 3, 1, 4, 2, 5).reshape(B, C, H, W)


if __name__ == "__main__":
    key = jax.random.PRNGKey(0)
    B, C, H, W = 2, 4, 16, 16
    P = 8
    x = jax.random.normal(key, (B, C, H, W), dtype=jnp.float32)

    # --- disc mode ---
    module = CorruptImage(patch_size=P, frac=0.5, mode="disc")
    corrupted, img_idxs = module(x, rng_seed=0)
    corrupted = jax.block_until_ready(corrupted)
    img_idxs = jax.block_until_ready(img_idxs)
    assert corrupted.shape == x.shape
    assert img_idxs.shape == (B, 1, H // P, W // P)

    n_total = B * (H // P) * (W // P)
    idxs_ref, shuffled_ref = _np_plan(n_total, 0.5, 0)
    x_np = np.asarray(x)
    patches_np = _np_patchify(x_np, P)
    expected = _np_unpatchify(patches_np[idxs_ref], B, C, H, W, P)
    np.testing.assert_allclose(np.asarray(corrupted), expected, rtol=0, atol=0)

    # --- mask mode ---
    module_m = CorruptImage(patch_size=P, frac=0.5, mode="mask")
    corrupted_m, _ = module_m(x, rng_seed=0)
    corrupted_m = jax.block_until_ready(corrupted_m)
    rows_out = _np_patchify(np.asarray(corrupted_m), P)
    untouched = np.setdiff1d(np.arange(n_total), shuffled_ref)
    np.testing.assert_allclose(rows_out[untouched], patches_np[untouched], rtol=0, atol=0)
    rand_np = np.asarray(jax.random.normal(jax.random.PRNGKey(1), (1, C * P * P),
                                           dtype=jnp.float32))
    np.testing.assert_allclose(rows_out[shuffled_ref],
                               np.broadcast_to(rand_np, (len(shuffled_ref), C * P * P)),
                               rtol=0, atol=0)

    # --- disc mode with feature padding (F = 3*8*8 = 192 -> padded to 256)
    #     and padded output rows (n_total = 4 -> padded to 8) ---
    x2 = jax.random.normal(jax.random.PRNGKey(2), (1, 3, 16, 16), dtype=jnp.float32)
    corrupted2, _ = CorruptImage(patch_size=P, frac=0.5, mode="disc")(x2, rng_seed=0)
    corrupted2 = jax.block_until_ready(corrupted2)
    n_total2 = 1 * (16 // P) * (16 // P)
    idxs2, _ = _np_plan(n_total2, 0.5, 0)
    patches2 = _np_patchify(np.asarray(x2), P)
    expected2 = _np_unpatchify(patches2[idxs2], 1, 3, 16, 16, P)
    np.testing.assert_allclose(np.asarray(corrupted2), expected2, rtol=0, atol=0)

    print("KERNEL_OK")
</pallas_src>

<mosaic_0001>
module attributes {stable_mosaic.version = 11 : i64} {
  func.func @kernel(%arg0: i32, %arg1: memref<8xi32, #tpu.memory_space<smem>>, %arg2: memref<8x256xf32, #tpu.memory_space<any>>, %arg3: memref<8x256xf32, #tpu.memory_space<vmem>>, %arg4: memref<!tpu.dma_semaphore, #tpu.memory_space<semaphore_mem>>) attributes {dimension_semantics = [#tpu.dimension_semantics<parallel>], iteration_bounds = array<i64: 1>, scalar_prefetch = 1 : i64, scratch_operands = 1 : i64, tpu.core_type = #tpu.core_type<tc>, window_params = [{}, {transform_indices = @transform_1, window_bounds = array<i64: 8, 256>}]} {
    %c8_i32 = arith.constant 8 : i32
    %0 = arith.muli %arg0, %c8_i32 : i32
    %c0_i32 = arith.constant 0 : i32
    %1 = arith.addi %0, %c0_i32 : i32
    %2 = arith.index_cast %1 : i32 to index
    %3 = memref.load %arg1[%2] : memref<8xi32, #tpu.memory_space<smem>>
    %c0_i32_0 = arith.constant 0 : i32
    %4 = tpu.memref_slice %arg2[%3, %c0_i32_0] : memref<8x256xf32, #tpu.memory_space<any>> -> memref<1x256xf32, #tpu.memory_space<any>>
    %c0_i32_1 = arith.constant 0 : i32
    %c0_i32_2 = arith.constant 0 : i32
    %5 = tpu.memref_slice %arg3[%c0_i32_1, %c0_i32_2] : memref<8x256xf32, #tpu.memory_space<vmem>> -> memref<1x256xf32, #tpu.memory_space<vmem>>
    tpu.enqueue_dma source(%4 : memref<1x256xf32, #tpu.memory_space<any>>) target(%5 : memref<1x256xf32, #tpu.memory_space<vmem>>) target_semaphore(%arg4 : memref<!tpu.dma_semaphore, #tpu.memory_space<semaphore_mem>>)
    %c1_i32 = arith.constant 1 : i32
    %6 = arith.addi %0, %c1_i32 : i32
    %7 = arith.index_cast %6 : i32 to index
    %8 = memref.load %arg1[%7] : memref<8xi32, #tpu.memory_space<smem>>
    %c0_i32_3 = arith.constant 0 : i32
    %9 = tpu.memref_slice %arg2[%8, %c0_i32_3] : memref<8x256xf32, #tpu.memory_space<any>> -> memref<1x256xf32, #tpu.memory_space<any>>
    %c1_i32_4 = arith.constant 1 : i32
    %c0_i32_5 = arith.constant 0 : i32
    %10 = tpu.memref_slice %arg3[%c1_i32_4, %c0_i32_5] : memref<8x256xf32, #tpu.memory_space<vmem>> -> memref<1x256xf32, #tpu.memory_space<vmem>>
    tpu.enqueue_dma source(%9 : memref<1x256xf32, #tpu.memory_space<any>>) target(%10 : memref<1x256xf32, #tpu.memory_space<vmem>>) target_semaphore(%arg4 : memref<!tpu.dma_semaphore, #tpu.memory_space<semaphore_mem>>)
    %c2_i32 = arith.constant 2 : i32
    %11 = arith.addi %0, %c2_i32 : i32
    %12 = arith.index_cast %11 : i32 to index
    %13 = memref.load %arg1[%12] : memref<8xi32, #tpu.memory_space<smem>>
    %c0_i32_6 = arith.constant 0 : i32
    %14 = tpu.memref_slice %arg2[%13, %c0_i32_6] : memref<8x256xf32, #tpu.memory_space<any>> -> memref<1x256xf32, #tpu.memory_space<any>>
    %c2_i32_7 = arith.constant 2 : i32
    %c0_i32_8 = arith.constant 0 : i32
    %15 = tpu.memref_slice %arg3[%c2_i32_7, %c0_i32_8] : memref<8x256xf32, #tpu.memory_space<vmem>> -> memref<1x256xf32, #tpu.memory_space<vmem>>
    tpu.enqueue_dma source(%14 : memref<1x256xf32, #tpu.memory_space<any>>) target(%15 : memref<1x256xf32, #tpu.memory_space<vmem>>) target_semaphore(%arg4 : memref<!tpu.dma_semaphore, #tpu.memory_space<semaphore_mem>>)
    %c3_i32 = arith.constant 3 : i32
    %16 = arith.addi %0, %c3_i32 : i32
    %17 = arith.index_cast %16 : i32 to index
    %18 = memref.load %arg1[%17] : memref<8xi32, #tpu.memory_space<smem>>
    %c0_i32_9 = arith.constant 0 : i32
    %19 = tpu.memref_slice %arg2[%18, %c0_i32_9] : memref<8x256xf32, #tpu.memory_space<any>> -> memref<1x256xf32, #tpu.memory_space<any>>
    %c3_i32_10 = arith.constant 3 : i32
    %c0_i32_11 = arith.constant 0 : i32
    %20 = tpu.memref_slice %arg3[%c3_i32_10, %c0_i32_11] : memref<8x256xf32, #tpu.memory_space<vmem>> -> memref<1x256xf32, #tpu.memory_space<vmem>>
    tpu.enqueue_dma source(%19 : memref<1x256xf32, #tpu.memory_space<any>>) target(%20 : memref<1x256xf32, #tpu.memory_space<vmem>>) target_semaphore(%arg4 : memref<!tpu.dma_semaphore, #tpu.memory_space<semaphore_mem>>)
    %c4_i32 = arith.constant 4 : i32
    %21 = arith.addi %0, %c4_i32 : i32
    %22 = arith.index_cast %21 : i32 to index
    %23 = memref.load %arg1[%22] : memref<8xi32, #tpu.memory_space<smem>>
    %c0_i32_12 = arith.constant 0 : i32
    %24 = tpu.memref_slice %arg2[%23, %c0_i32_12] : memref<8x256xf32, #tpu.memory_space<any>> -> memref<1x256xf32, #tpu.memory_space<any>>
    %c4_i32_13 = arith.constant 4 : i32
    %c0_i32_14 = arith.constant 0 : i32
    %25 = tpu.memref_slice %arg3[%c4_i32_13, %c0_i32_14] : memref<8x256xf32, #tpu.memory_space<vmem>> -> memref<1x256xf32, #tpu.memory_space<vmem>>
    tpu.enqueue_dma source(%24 : memref<1x256xf32, #tpu.memory_space<any>>) target(%25 : memref<1x256xf32, #tpu.memory_space<vmem>>) target_semaphore(%arg4 : memref<!tpu.dma_semaphore, #tpu.memory_space<semaphore_mem>>)
    %c5_i32 = arith.constant 5 : i32
    %26 = arith.addi %0, %c5_i32 : i32
    %27 = arith.index_cast %26 : i32 to index
    %28 = memref.load %arg1[%27] : memref<8xi32, #tpu.memory_space<smem>>
    %c0_i32_15 = arith.constant 0 : i32
    %29 = tpu.memref_slice %arg2[%28, %c0_i32_15] : memref<8x256xf32, #tpu.memory_space<any>> -> memref<1x256xf32, #tpu.memory_space<any>>
    %c5_i32_16 = arith.constant 5 : i32
    %c0_i32_17 = arith.constant 0 : i32
    %30 = tpu.memref_slice %arg3[%c5_i32_16, %c0_i32_17] : memref<8x256xf32, #tpu.memory_space<vmem>> -> memref<1x256xf32, #tpu.memory_space<vmem>>
    tpu.enqueue_dma source(%29 : memref<1x256xf32, #tpu.memory_space<any>>) target(%30 : memref<1x256xf32, #tpu.memory_space<vmem>>) target_semaphore(%arg4 : memref<!tpu.dma_semaphore, #tpu.memory_space<semaphore_mem>>)
    %c6_i32 = arith.constant 6 : i32
    %31 = arith.addi %0, %c6_i32 : i32
    %32 = arith.index_cast %31 : i32 to index
    %33 = memref.load %arg1[%32] : memref<8xi32, #tpu.memory_space<smem>>
    %c0_i32_18 = arith.constant 0 : i32
    %34 = tpu.memref_slice %arg2[%33, %c0_i32_18] : memref<8x256xf32, #tpu.memory_space<any>> -> memref<1x256xf32, #tpu.memory_space<any>>
    %c6_i32_19 = arith.constant 6 : i32
    %c0_i32_20 = arith.constant 0 : i32
    %35 = tpu.memref_slice %arg3[%c6_i32_19, %c0_i32_20] : memref<8x256xf32, #tpu.memory_space<vmem>> -> memref<1x256xf32, #tpu.memory_space<vmem>>
    tpu.enqueue_dma source(%34 : memref<1x256xf32, #tpu.memory_space<any>>) target(%35 : memref<1x256xf32, #tpu.memory_space<vmem>>) target_semaphore(%arg4 : memref<!tpu.dma_semaphore, #tpu.memory_space<semaphore_mem>>)
    %c7_i32 = arith.constant 7 : i32
    %36 = arith.addi %0, %c7_i32 : i32
    %37 = arith.index_cast %36 : i32 to index
    %38 = memref.load %arg1[%37] : memref<8xi32, #tpu.memory_space<smem>>
    %c0_i32_21 = arith.constant 0 : i32
    %39 = tpu.memref_slice %arg2[%38, %c0_i32_21] : memref<8x256xf32, #tpu.memory_space<any>> -> memref<1x256xf32, #tpu.memory_space<any>>
    %c7_i32_22 = arith.constant 7 : i32
    %c0_i32_23 = arith.constant 0 : i32
    %40 = tpu.memref_slice %arg3[%c7_i32_22, %c0_i32_23] : memref<8x256xf32, #tpu.memory_space<vmem>> -> memref<1x256xf32, #tpu.memory_space<vmem>>
    tpu.enqueue_dma source(%39 : memref<1x256xf32, #tpu.memory_space<any>>) target(%40 : memref<1x256xf32, #tpu.memory_space<vmem>>) target_semaphore(%arg4 : memref<!tpu.dma_semaphore, #tpu.memory_space<semaphore_mem>>)
    %c0_i32_24 = arith.constant 0 : i32
    %c0_i32_25 = arith.constant 0 : i32
    %41 = tpu.memref_slice %arg2[%c0_i32_24, %c0_i32_25] : memref<8x256xf32, #tpu.memory_space<any>> -> memref<8x256xf32, #tpu.memory_space<any>>
    tpu.wait_dma2 semaphore(%arg4 : memref<!tpu.dma_semaphore, #tpu.memory_space<semaphore_mem>>) src(%41 : memref<8x256xf32, #tpu.memory_space<any>>) dst(%arg3 : memref<8x256xf32, #tpu.memory_space<vmem>>)
    return
  }
  func.func @transform_1(%arg0: i32, %arg1: memref<8xi32, #tpu.memory_space<smem>>) -> (i32, i32) {
    %c0_i32 = arith.constant 0 : i32
    %c0_i32_0 = arith.constant 0 : i32
    return %arg0, %c0_i32 : i32, i32
  }
}

</mosaic_0001>

<llo_original>
// kernel: _corrupt_device.1
$region0: #{_corrupt_device.1}
  #allocation0 [shape = 'u32[]', space=smem, size = 0x4, offset = 0x4, fixed_abs, tag = 'smem constant byte address 0x4 - core index']
  #allocation1 [shape = 'u32[72,128]{1,0:T(1,128)}', space=vmem, size = 0x9000, scoped, tag = 'internal scratch']
  #allocation2 [shape = 's32[1]{0}', space=sflag, size = 0x4, scoped, tag = 'scratch operand']
  #allocation3 [shape = 's32[1]{0}', space=sflag, size = 0x4, scoped, tag = 'scoped memory for _corrupt_device.1']
  #allocation4 [shape = 'u8[512]{0}', space=smem, size = 0x200, scoped, tag = 'prefetched SMEM operand 0']
  #allocation5 [shape = 's32[]', space=sflag, size = 0x4, offset = 0, fixed_abs, tag = 'sflag constant byte address 0x0 - dummy sync flag']
  #allocation6 [shape = 's32[]', space=sflag, size = 0x4, offset = 0, fixed_abs, tag = 'sflag constant byte address 0x0 - dummy sync flag']
  #allocation7 [shape = 's32[]', space=sflag, size = 0x4, offset = 0, fixed_abs, tag = 'sflag constant byte address 0x0 - dummy sync flag']
  #allocation8 [shape = 's32[]', space=sflag, size = 0x4, offset = 0, fixed_abs, tag = 'sflag constant byte address 0x0 - dummy sync flag']
  #allocation9 [shape = 's32[]', space=sflag, size = 0x4, offset = 0, fixed_abs, tag = 'sflag constant byte address 0x0 - dummy sync flag']
  #allocation10 [shape = 's32[]', space=sflag, size = 0x4, offset = 0, fixed_abs, tag = 'sflag constant byte address 0x0 - dummy sync flag']
  #allocation11 [shape = 's32[]', space=sflag, size = 0x4, offset = 0, fixed_abs, tag = 'sflag constant byte address 0x0 - dummy sync flag']
  #allocation12 [shape = 's32[]', space=sflag, size = 0x4, offset = 0, fixed_abs, tag = 'sflag constant byte address 0x0 - dummy sync flag']
  %s0 = inlined_call_operand.vmem [shape: s32[8], index: 0, kind: input, shape index: {}]
  %s1 = inlined_call_operand.vmem [shape: f32[8,256], index: 1, kind: input, shape index: {}]
  %s2 = inlined_call_operand.vmem [shape: f32[8,256], index: 2, kind: output, shape index: {}]
  %s3 = sld [smem:[#allocation0]]
  $region250: #{_corrupt_device.1} parent=0
    _
  %s5 = ssub.s32 1, %s3
  %s6 = scalar_select 0, %s5, %s3
  %s8 = sshll.u32 %s0, 4
  %s9 = int_to_ptr.vmem [resolvable:$true] %s8
  %11 = dma.vmem_to_smem %s9, 16, [#allocation4], [#allocation3]
  %13 = dma.done [#allocation3], 16
  %14 = sfence
  %s15 = smul.u32 0, 8
  %s16 = sld [smem:[#allocation4 + %s15]]
  %s17 = sshrl.u32 %s16, 3
  %s18 = sand.u32 %s16, 7
  %s19 = smul.u32 %s17, 16
  %s20 = sadd.s32 %s18, %s19
  %s21 = scalar_lea.vmem %s1, %s20
  // Predicated region
  $region2: #{_corrupt_device.1} parent=0 // pred_check
    _
  $region3: #{_corrupt_device.1} parent=0 // pred_check_branch
    %23 = sbr.rel target = $region5
  $region4: #{_corrupt_device.1} parent=0 // pred_region
    // Predicated region
    $region17: #{_corrupt_device.1} parent=4 // pred_check
      _
    $region18: #{_corrupt_device.1} parent=4 // pred_check_branch
      %41 = sbr.rel (0) target = $region20
    $region19: #{_corrupt_device.1} parent=4 // pred_region
      %s43 = ssub.s32 2, 1
      loop: start=0, step=1, limit=1
      $region21: #{_corrupt_device.1} parent=19 // loop_pre_header
        _
      $region22: #{_corrupt_device.1} parent=19 // loop_header
        %s45 = sphi 0, %s49
        %p46 = scmp.ge.s32.totalorder %s45, 1
        %s50 = sphi %s21, %s21
        %s51 = sphi %s2, %s2
      $region23: #{_corrupt_device.1} parent=19 // loop_header_branch
        %48 = sbr.rel (%p46) target = $region27
      $region24: #{_corrupt_device.1} parent=19 // loop_body
        %v52 = vld [vmem:[%s50] sm:%s43]
        %53 = vst [vmem:[%s51] sm:%s43] %v52
        %v54 = vld [vmem:[%s50 + $0x8] sm:%s43]
        %55 = vst [vmem:[%s51 + $0x8] sm:%s43] %v54
      $region25: #{_corrupt_device.1} parent=19 // loop_footer
        %s49 = sadd.s32 1, %s45
      $region26: #{_corrupt_device.1} parent=19 // loop_footer_branch
        %44 = sbr.rel target = $region22
      $region27: #{_corrupt_device.1} parent=19 // loop_exit
        _
    $region20: #{_corrupt_device.1} parent=4 // pred_fallthru
      _
  $region5: #{_corrupt_device.1} parent=0 // pred_fallthru
    _
  // Predicated region
  $region6: #{_corrupt_device.1} parent=0 // pred_check
    _
  $region7: #{_corrupt_device.1} parent=0 // pred_check_branch
    %25 = sbr.rel (0) target = $region9
  $region8: #{_corrupt_device.1} parent=0 // pred_region
    %s27 = ssub.s32 2, 1
    loop: start=0, step=1, limit=1
    $region10: #{_corrupt_device.1} parent=8 // loop_pre_header
      _
    $region11: #{_corrupt_device.1} parent=8 // loop_header
      %s29 = sphi 0, %s33
      %p30 = scmp.ge.s32.totalorder %s29, 1
      %s34 = sphi %s21, %s21
      %s35 = sphi %s2, %s2
    $region12: #{_corrupt_device.1} parent=8 // loop_header_branch
      %32 = sbr.rel (%p30) target = $region16
    $region13: #{_corrupt_device.1} parent=8 // loop_body
      %v36 = vld [vmem:[%s34] sm:%s27]
      %37 = vst [vmem:[%s35] sm:%s27] %v36
      %v38 = vld [vmem:[%s34 + $0x8] sm:%s27]
      %39 = vst [vmem:[%s35 + $0x8] sm:%s27] %v38
    $region14: #{_corrupt_device.1} parent=8 // loop_footer
      %s33 = sadd.s32 1, %s29
    $region15: #{_corrupt_device.1} parent=8 // loop_footer_branch
      %28 = sbr.rel target = $region11
    $region16: #{_corrupt_device.1} parent=8 // loop_exit
      _
  $region9: #{_corrupt_device.1} parent=0 // pred_fallthru
    _
  // Predicated region
  $region28: #{_corrupt_device.1} parent=0 // pred_check
    _
  $region29: #{_corrupt_device.1} parent=0 // pred_check_branch
    %58 = sbr.rel (0) target = $region31
  $region30: #{_corrupt_device.1} parent=0 // pred_region
    %59 = vsyncadd [#allocation2], 32
  $region31: #{_corrupt_device.1} parent=0 // pred_fallthru
    _
  %s60 = sadd.s32 %s15, 1
  %s61 = sld [smem:[#allocation4 + %s60]]
  %s62 = sshrl.u32 %s61, 3
  %s63 = sand.u32 %s61, 7
  %s64 = smul.u32 %s62, 16
  %s65 = sadd.s32 %s63, %s64
  %s66 = scalar_lea.vmem %s1, %s65
  %s67 = scalar_lea.vmem %s2, 1
  // Predicated region
  $region32: #{_corrupt_device.1} parent=0 // pred_check
    _
  $region33: #{_corrupt_device.1} parent=0 // pred_check_branch
    %69 = sbr.rel target = $region35
  $region34: #{_corrupt_device.1} parent=0 // pred_region
    // Predicated region
    $region47: #{_corrupt_device.1} parent=34 // pred_check
      _
    $region48: #{_corrupt_device.1} parent=34 // pred_check_branch
      %87 = sbr.rel (0) target = $region50
    $region49: #{_corrupt_device.1} parent=34 // pred_region
      %s89 = ssub.s32 2, 1
      loop: start=0, step=1, limit=1
      $region51: #{_corrupt_device.1} parent=49 // loop_pre_header
        _
      $region52: #{_corrupt_device.1} parent=49 // loop_header
        %s91 = sphi 0, %s95
        %p92 = scmp.ge.s32.totalorder %s91, 1
        %s96 = sphi %s66, %s66
        %s97 = sphi %s67, %s67
      $region53: #{_corrupt_device.1} parent=49 // loop_header_branch
        %94 = sbr.rel (%p92) target = $region57
      $region54: #{_corrupt_device.1} parent=49 // loop_body
        %v98 = vld [vmem:[%s96] sm:%s89]
        %99 = vst [vmem:[%s97] sm:%s89] %v98
        %v100 = vld [vmem:[%s96 + $0x8] sm:%s89]
        %101 = vst [vmem:[%s97 + $0x8] sm:%s89] %v100
      $region55: #{_corrupt_device.1} parent=49 // loop_footer
        %s95 = sadd.s32 1, %s91
      $region56: #{_corrupt_device.1} parent=49 // loop_footer_branch
        %90 = sbr.rel target = $region52
      $region57: #{_corrupt_device.1} parent=49 // loop_exit
        _
    $region50: #{_corrupt_device.1} parent=34 // pred_fallthru
      _
  $region35: #{_corrupt_device.1} parent=0 // pred_fallthru
    _
  // Predicated region
  $region36: #{_corrupt_device.1} parent=0 // pred_check
    _
  $region37: #{_corrupt_device.1} parent=0 // pred_check_branch
    %71 = sbr.rel (0) target = $region39
  $region38: #{_corrupt_device.1} parent=0 // pred_region
    %s73 = ssub.s32 2, 1
    loop: start=0, step=1, limit=1
    $region40: #{_corrupt_device.1} parent=38 // loop_pre_header
      _
    $region41: #{_corrupt_device.1} parent=38 // loop_header
      %s75 = sphi 0, %s79
      %p76 = scmp.ge.s32.totalorder %s75, 1
      %s80 = sphi %s66, %s66
      %s81 = sphi %s67, %s67
    $region42: #{_corrupt_device.1} parent=38 // loop_header_branch
      %78 = sbr.rel (%p76) target = $region46
    $region43: #{_corrupt_device.1} parent=38 // loop_body
      %v82 = vld [vmem:[%s80] sm:%s73]
      %83 = vst [vmem:[%s81] sm:%s73] %v82
      %v84 = vld [vmem:[%s80 + $0x8] sm:%s73]
      %85 = vst [vmem:[%s81 + $0x8] sm:%s73] %v84
    $region44: #{_corrupt_device.1} parent=38 // loop_footer
      %s79 = sadd.s32 1, %s75
    $region45: #{_corrupt_device.1} parent=38 // loop_footer_branch
      %74 = sbr.rel target = $region41
    $region46: #{_corrupt_device.1} parent=38 // loop_exit
      _
  $region39: #{_corrupt_device.1} parent=0 // pred_fallthru
    _
  // Predicated region
  $region58: #{_corrupt_device.1} parent=0 // pred_check
    _
  $region59: #{_corrupt_device.1} parent=0 // pred_check_branch
    %104 = sbr.rel (0) target = $region61
  $region60: #{_corrupt_device.1} parent=0 // pred_region
    %105 = vsyncadd [#allocation2], 32
  $region61: #{_corrupt_device.1} parent=0 // pred_fallthru
    _
  %s106 = sadd.s32 %s15, 2
  %s107 = sld [smem:[#allocation4 + %s106]]
  %s108 = sshrl.u32 %s107, 3
  %s109 = sand.u32 %s107, 7
  %s110 = smul.u32 %s108, 16
  %s111 = sadd.s32 %s109, %s110
  %s112 = scalar_lea.vmem %s1, %s111
  %s113 = scalar_lea.vmem %s2, 2
  // Predicated region
  $region62: #{_corrupt_device.1} parent=0 // pred_check
    _
  $region63: #{_corrupt_device.1} parent=0 // pred_check_branch
    %115 = sbr.rel target = $region65
  $region64: #{_corrupt_device.1} parent=0 // pred_region
    // Predicated region
    $region77: #{_corrupt_device.1} parent=64 // pred_check
      _
    $region78: #{_corrupt_device.1} parent=64 // pred_check_branch
      %133 = sbr.rel (0) target = $region80
    $region79: #{_corrupt_device.1} parent=64 // pred_region
      %s135 = ssub.s32 2, 1
      loop: start=0, step=1, limit=1
      $region81: #{_corrupt_device.1} parent=79 // loop_pre_header
        _
      $region82: #{_corrupt_device.1} parent=79 // loop_header
        %s137 = sphi 0, %s141
        %p138 = scmp.ge.s32.totalorder %s137, 1
        %s142 = sphi %s112, %s112
        %s143 = sphi %s113, %s113
      $region83: #{_corrupt_device.1} parent=79 // loop_header_branch
        %140 = sbr.rel (%p138) target = $region87
      $region84: #{_corrupt_device.1} parent=79 // loop_body
        %v144 = vld [vmem:[%s142] sm:%s135]
        %145 = vst [vmem:[%s143] sm:%s135] %v144
        %v146 = vld [vmem:[%s142 + $0x8] sm:%s135]
        %147 = vst [vmem:[%s143 + $0x8] sm:%s135] %v146
      $region85: #{_corrupt_device.1} parent=79 // loop_footer
        %s141 = sadd.s32 1, %s137
      $region86: #{_corrupt_device.1} parent=79 // loop_footer_branch
        %136 = sbr.rel target = $region82
      $region87: #{_corrupt_device.1} parent=79 // loop_exit
        _
    $region80: #{_corrupt_device.1} parent=64 // pred_fallthru
      _
  $region65: #{_corrupt_device.1} parent=0 // pred_fallthru
    _
  // Predicated region
  $region66: #{_corrupt_device.1} parent=0 // pred_check
    _
  $region67: #{_corrupt_device.1} parent=0 // pred_check_branch
    %117 = sbr.rel (0) target = $region69
  $region68: #{_corrupt_device.1} parent=0 // pred_region
    %s119 = ssub.s32 2, 1
    loop: start=0, step=1, limit=1
    $region70: #{_corrupt_device.1} parent=68 // loop_pre_header
      _
    $region71: #{_corrupt_device.1} parent=68 // loop_header
      %s121 = sphi 0, %s125
      %p122 = scmp.ge.s32.totalorder %s121, 1
      %s126 = sphi %s112, %s112
      %s127 = sphi %s113, %s113
    $region72: #{_corrupt_device.1} parent=68 // loop_header_branch
      %124 = sbr.rel (%p122) target = $region76
    $region73: #{_corrupt_device.1} parent=68 // loop_body
      %v128 = vld [vmem:[%s126] sm:%s119]
      %129 = vst [vmem:[%s127] sm:%s119] %v128
      %v130 = vld [vmem:[%s126 + $0x8] sm:%s119]
      %131 = vst [vmem:[%s127 + $0x8] sm:%s119] %v130
    $region74: #{_corrupt_device.1} parent=68 // loop_footer
      %s125 = sadd.s32 1, %s121
    $region75: #{_corrupt_device.1} parent=68 // loop_footer_branch
      %120 = sbr.rel target = $region71
    $region76: #{_corrupt_device.1} parent=68 // loop_exit
      _
  $region69: #{_corrupt_device.1} parent=0 // pred_fallthru
    _
  // Predicated region
  $region88: #{_corrupt_device.1} parent=0 // pred_check
    _
  $region89: #{_corrupt_device.1} parent=0 // pred_check_branch
    %150 = sbr.rel (0) target = $region91
  $region90: #{_corrupt_device.1} parent=0 // pred_region
    %151 = vsyncadd [#allocation2], 32
  $region91: #{_corrupt_device.1} parent=0 // pred_fallthru
    _
  %s152 = sadd.s32 %s15, 3
  %s153 = sld [smem:[#allocation4 + %s152]]
  %s154 = sshrl.u32 %s153, 3
  %s155 = sand.u32 %s153, 7
  %s156 = smul.u32 %s154, 16
  %s157 = sadd.s32 %s155, %s156
  %s158 = scalar_lea.vmem %s1, %s157
  %s159 = scalar_lea.vmem %s2, 3
  // Predicated region
  $region92: #{_corrupt_device.1} parent=0 // pred_check
    _
  $region93: #{_corrupt_device.1} parent=0 // pred_check_branch
    %161 = sbr.rel target = $region95
  $region94: #{_corrupt_device.1} parent=0 // pred_region
    // Predicated region
    $region107: #{_corrupt_device.1} parent=94 // pred_check
      _
    $region108: #{_corrupt_device.1} parent=94 // pred_check_branch
      %179 = sbr.rel (0) target = $region110
    $region109: #{_corrupt_device.1} parent=94 // pred_region
      %s181 = ssub.s32 2, 1
      loop: start=0, step=1, limit=1
      $region111: #{_corrupt_device.1} parent=109 // loop_pre_header
        _
      $region112: #{_corrupt_device.1} parent=109 // loop_header
        %s183 = sphi 0, %s187
        %p184 = scmp.ge.s32.totalorder %s183, 1
        %s188 = sphi %s158, %s158
        %s189 = sphi %s159, %s159
      $region113: #{_corrupt_device.1} parent=109 // loop_header_branch
        %186 = sbr.rel (%p184) target = $region117
      $region114: #{_corrupt_device.1} parent=109 // loop_body
        %v190 = vld [vmem:[%s188] sm:%s181]
        %191 = vst [vmem:[%s189] sm:%s181] %v190
        %v192 = vld [vmem:[%s188 + $0x8] sm:%s181]
        %193 = vst [vmem:[%s189 + $0x8] sm:%s181] %v192
      $region115: #{_corrupt_device.1} parent=109 // loop_footer
        %s187 = sadd.s32 1, %s183
      $region116: #{_corrupt_device.1} parent=109 // loop_footer_branch
        %182 = sbr.rel target = $region112
      $region117: #{_corrupt_device.1} parent=109 // loop_exit
        _
    $region110: #{_corrupt_device.1} parent=94 // pred_fallthru
      _
  $region95: #{_corrupt_device.1} parent=0 // pred_fallthru
    _
  // Predicated region
  $region96: #{_corrupt_device.1} parent=0 // pred_check
    _
  $region97: #{_corrupt_device.1} parent=0 // pred_check_branch
    %163 = sbr.rel (0) target = $region99
  $region98: #{_corrupt_device.1} parent=0 // pred_region
    %s165 = ssub.s32 2, 1
    loop: start=0, step=1, limit=1
    $region100: #{_corrupt_device.1} parent=98 // loop_pre_header
      _
    $region101: #{_corrupt_device.1} parent=98 // loop_header
      %s167 = sphi 0, %s171
      %p168 = scmp.ge.s32.totalorder %s167, 1
      %s172 = sphi %s158, %s158
      %s173 = sphi %s159, %s159
    $region102: #{_corrupt_device.1} parent=98 // loop_header_branch
      %170 = sbr.rel (%p168) target = $region106
    $region103: #{_corrupt_device.1} parent=98 // loop_body
      %v174 = vld [vmem:[%s172] sm:%s165]
      %175 = vst [vmem:[%s173] sm:%s165] %v174
      %v176 = vld [vmem:[%s172 + $0x8] sm:%s165]
      %177 = vst [vmem:[%s173 + $0x8] sm:%s165] %v176
    $region104: #{_corrupt_device.1} parent=98 // loop_footer
      %s171 = sadd.s32 1, %s167
    $region105: #{_corrupt_device.1} parent=98 // loop_footer_branch
      %166 = sbr.rel target = $region101
    $region106: #{_corrupt_device.1} parent=98 // loop_exit
      _
  $region99: #{_corrupt_device.1} parent=0 // pred_fallthru
    _
  // Predicated region
  $region118: #{_corrupt_device.1} parent=0 // pred_check
    _
  $region119: #{_corrupt_device.1} parent=0 // pred_check_branch
    %196 = sbr.rel (0) target = $region121
  $region120: #{_corrupt_device.1} parent=0 // pred_region
    %197 = vsyncadd [#allocation2], 32
  $region121: #{_corrupt_device.1} parent=0 // pred_fallthru
    _
  %s198 = sadd.s32 %s15, 4
  %s199 = sld [smem:[#allocation4 + %s198]]
  %s200 = sshrl.u32 %s199, 3
  %s201 = sand.u32 %s199, 7
  %s202 = smul.u32 %s200, 16
  %s203 = sadd.s32 %s201, %s202
  %s204 = scalar_lea.vmem %s1, %s203
  %s205 = scalar_lea.vmem %s2, 4
  // Predicated region
  $region122: #{_corrupt_device.1} parent=0 // pred_check
    _
  $region123: #{_corrupt_device.1} parent=0 // pred_check_branch
    %207 = sbr.rel target = $region125
  $region124: #{_corrupt_device.1} parent=0 // pred_region
    // Predicated region
    $region137: #{_corrupt_device.1} parent=124 // pred_check
      _
    $region138: #{_corrupt_device.1} parent=124 // pred_check_branch
      %225 = sbr.rel (0) target = $region140
    $region139: #{_corrupt_device.1} parent=124 // pred_region
      %s227 = ssub.s32 2, 1
      loop: start=0, step=1, limit=1
      $region141: #{_corrupt_device.1} parent=139 // loop_pre_header
        _
      $region142: #{_corrupt_device.1} parent=139 // loop_header
        %s229 = sphi 0, %s233
        %p230 = scmp.ge.s32.totalorder %s229, 1
        %s234 = sphi %s204, %s204
        %s235 = sphi %s205, %s205
      $region143: #{_corrupt_device.1} parent=139 // loop_header_branch
        %232 = sbr.rel (%p230) target = $region147
      $region144: #{_corrupt_device.1} parent=139 // loop_body
        %v236 = vld [vmem:[%s234] sm:%s227]
        %237 = vst [vmem:[%s235] sm:%s227] %v236
        %v238 = vld [vmem:[%s234 + $0x8] sm:%s227]
        %239 = vst [vmem:[%s235 + $0x8] sm:%s227] %v238
      $region145: #{_corrupt_device.1} parent=139 // loop_footer
        %s233 = sadd.s32 1, %s229
      $region146: #{_corrupt_device.1} parent=139 // loop_footer_branch
        %228 = sbr.rel target = $region142
      $region147: #{_corrupt_device.1} parent=139 // loop_exit
        _
    $region140: #{_corrupt_device.1} parent=124 // pred_fallthru
      _
  $region125: #{_corrupt_device.1} parent=0 // pred_fallthru
    _
  // Predicated region
  $region126: #{_corrupt_device.1} parent=0 // pred_check
    _
  $region127: #{_corrupt_device.1} parent=0 // pred_check_branch
    %209 = sbr.rel (0) target = $region129
  $region128: #{_corrupt_device.1} parent=0 // pred_region
    %s211 = ssub.s32 2, 1
    loop: start=0, step=1, limit=1
    $region130: #{_corrupt_device.1} parent=128 // loop_pre_header
      _
    $region131: #{_corrupt_device.1} parent=128 // loop_header
      %s213 = sphi 0, %s217
      %p214 = scmp.ge.s32.totalorder %s213, 1
      %s218 = sphi %s204, %s204
      %s219 = sphi %s205, %s205
    $region132: #{_corrupt_device.1} parent=128 // loop_header_branch
      %216 = sbr.rel (%p214) target = $region136
    $region133: #{_corrupt_device.1} parent=128 // loop_body
      %v220 = vld [vmem:[%s218] sm:%s211]
      %221 = vst [vmem:[%s219] sm:%s211] %v220
      %v222 = vld [vmem:[%s218 + $0x8] sm:%s211]
      %223 = vst [vmem:[%s219 + $0x8] sm:%s211] %v222
    $region134: #{_corrupt_device.1} parent=128 // loop_footer
      %s217 = sadd.s32 1, %s213
    $region135: #{_corrupt_device.1} parent=128 // loop_footer_branch
      %212 = sbr.rel target = $region131
    $region136: #{_corrupt_device.1} parent=128 // loop_exit
      _
  $region129: #{_corrupt_device.1} parent=0 // pred_fallthru
    _
  // Predicated region
  $region148: #{_corrupt_device.1} parent=0 // pred_check
    _
  $region149: #{_corrupt_device.1} parent=0 // pred_check_branch
    %242 = sbr.rel (0) target = $region151
  $region150: #{_corrupt_device.1} parent=0 // pred_region
    %243 = vsyncadd [#allocation2], 32
  $region151: #{_corrupt_device.1} parent=0 // pred_fallthru
    _
  %s244 = sadd.s32 %s15, 5
  %s245 = sld [smem:[#allocation4 + %s244]]
  %s246 = sshrl.u32 %s245, 3
  %s247 = sand.u32 %s245, 7
  %s248 = smul.u32 %s246, 16
  %s249 = sadd.s32 %s247, %s248
  %s250 = scalar_lea.vmem %s1, %s249
  %s251 = scalar_lea.vmem %s2, 5
  // Predicated region
  $region152: #{_corrupt_device.1} parent=0 // pred_check
    _
  $region153: #{_corrupt_device.1} parent=0 // pred_check_branch
    %253 = sbr.rel target = $region155
  $region154: #{_corrupt_device.1} parent=0 // pred_region
    // Predicated region
    $region167: #{_corrupt_device.1} parent=154 // pred_check
      _
    $region168: #{_corrupt_device.1} parent=154 // pred_check_branch
      %271 = sbr.rel (0) target = $region170
    $region169: #{_corrupt_device.1} parent=154 // pred_region
      %s273 = ssub.s32 2, 1
      loop: start=0, step=1, limit=1
      $region171: #{_corrupt_device.1} parent=169 // loop_pre_header
        _
      $region172: #{_corrupt_device.1} parent=169 // loop_header
        %s275 = sphi 0, %s279
        %p276 = scmp.ge.s32.totalorder %s275, 1
        %s280 = sphi %s250, %s250
        %s281 = sphi %s251, %s251
      $region173: #{_corrupt_device.1} parent=169 // loop_header_branch
        %278 = sbr.rel (%p276) target = $region177
      $region174: #{_corrupt_device.1} parent=169 // loop_body
        %v282 = vld [vmem:[%s280] sm:%s273]
        %283 = vst [vmem:[%s281] sm:%s273] %v282
        %v284 = vld [vmem:[%s280 + $0x8] sm:%s273]
        %285 = vst [vmem:[%s281 + $0x8] sm:%s273] %v284
      $region175: #{_corrupt_device.1} parent=169 // loop_footer
        %s279 = sadd.s32 1, %s275
      $region176: #{_corrupt_device.1} parent=169 // loop_footer_branch
        %274 = sbr.rel target = $region172
      $region177: #{_corrupt_device.1} parent=169 // loop_exit
        _
    $region170: #{_corrupt_device.1} parent=154 // pred_fallthru
      _
  $region155: #{_corrupt_device.1} parent=0 // pred_fallthru
    _
  // Predicated region
  $region156: #{_corrupt_device.1} parent=0 // pred_check
    _
  $region157: #{_corrupt_device.1} parent=0 // pred_check_branch
    %255 = sbr.rel (0) target = $region159
  $region158: #{_corrupt_device.1} parent=0 // pred_region
    %s257 = ssub.s32 2, 1
    loop: start=0, step=1, limit=1
    $region160: #{_corrupt_device.1} parent=158 // loop_pre_header
      _
    $region161: #{_corrupt_device.1} parent=158 // loop_header
      %s259 = sphi 0, %s263
      %p260 = scmp.ge.s32.totalorder %s259, 1
      %s264 = sphi %s250, %s250
      %s265 = sphi %s251, %s251
    $region162: #{_corrupt_device.1} parent=158 // loop_header_branch
      %262 = sbr.rel (%p260) target = $region166
    $region163: #{_corrupt_device.1} parent=158 // loop_body
      %v266 = vld [vmem:[%s264] sm:%s257]
      %267 = vst [vmem:[%s265] sm:%s257] %v266
      %v268 = vld [vmem:[%s264 + $0x8] sm:%s257]
      %269 = vst [vmem:[%s265 + $0x8] sm:%s257] %v268
    $region164: #{_corrupt_device.1} parent=158 // loop_footer
      %s263 = sadd.s32 1, %s259
    $region165: #{_corrupt_device.1} parent=158 // loop_footer_branch
      %258 = sbr.rel target = $region161
    $region166: #{_corrupt_device.1} parent=158 // loop_exit
      _
  $region159: #{_corrupt_device.1} parent=0 // pred_fallthru
    _
  // Predicated region
  $region178: #{_corrupt_device.1} parent=0 // pred_check
    _
  $region179: #{_corrupt_device.1} parent=0 // pred_check_branch
    %288 = sbr.rel (0) target = $region181
  $region180: #{_corrupt_device.1} parent=0 // pred_region
    %289 = vsyncadd [#allocation2], 32
  $region181: #{_corrupt_device.1} parent=0 // pred_fallthru
    _
  %s290 = sadd.s32 %s15, 6
  %s291 = sld [smem:[#allocation4 + %s290]]
  %s292 = sshrl.u32 %s291, 3
  %s293 = sand.u32 %s291, 7
  %s294 = smul.u32 %s292, 16
  %s295 = sadd.s32 %s293, %s294
  %s296 = scalar_lea.vmem %s1, %s295
  %s297 = scalar_lea.vmem %s2, 6
  // Predicated region
  $region182: #{_corrupt_device.1} parent=0 // pred_check
    _
  $region183: #{_corrupt_device.1} parent=0 // pred_check_branch
    %299 = sbr.rel target = $region185
  $region184: #{_corrupt_device.1} parent=0 // pred_region
    // Predicated region
    $region197: #{_corrupt_device.1} parent=184 // pred_check
      _
    $region198: #{_corrupt_device.1} parent=184 // pred_check_branch
      %317 = sbr.rel (0) target = $region200
    $region199: #{_corrupt_device.1} parent=184 // pred_region
      %s319 = ssub.s32 2, 1
      loop: start=0, step=1, limit=1
      $region201: #{_corrupt_device.1} parent=199 // loop_pre_header
        _
      $region202: #{_corrupt_device.1} parent=199 // loop_header
        %s321 = sphi 0, %s325
        %p322 = scmp.ge.s32.totalorder %s321, 1
        %s326 = sphi %s296, %s296
        %s327 = sphi %s297, %s297
      $region203: #{_corrupt_device.1} parent=199 // loop_header_branch
        %324 = sbr.rel (%p322) target = $region207
      $region204: #{_corrupt_device.1} parent=199 // loop_body
        %v328 = vld [vmem:[%s326] sm:%s319]
        %329 = vst [vmem:[%s327] sm:%s319] %v328
        %v330 = vld [vmem:[%s326 + $0x8] sm:%s319]
        %331 = vst [vmem:[%s327 + $0x8] sm:%s319] %v330
      $region205: #{_corrupt_device.1} parent=199 // loop_footer
        %s325 = sadd.s32 1, %s321
      $region206: #{_corrupt_device.1} parent=199 // loop_footer_branch
        %320 = sbr.rel target = $region202
      $region207: #{_corrupt_device.1} parent=199 // loop_exit
        _
    $region200: #{_corrupt_device.1} parent=184 // pred_fallthru
      _
  $region185: #{_corrupt_device.1} parent=0 // pred_fallthru
    _
  // Predicated region
  $region186: #{_corrupt_device.1} parent=0 // pred_check
    _
  $region187: #{_corrupt_device.1} parent=0 // pred_check_branch
    %301 = sbr.rel (0) target = $region189
  $region188: #{_corrupt_device.1} parent=0 // pred_region
    %s303 = ssub.s32 2, 1
    loop: start=0, step=1, limit=1
    $region190: #{_corrupt_device.1} parent=188 // loop_pre_header
      _
    $region191: #{_corrupt_device.1} parent=188 // loop_header
      %s305 = sphi 0, %s309
      %p306 = scmp.ge.s32.totalorder %s305, 1
      %s310 = sphi %s296, %s296
      %s311 = sphi %s297, %s297
    $region192: #{_corrupt_device.1} parent=188 // loop_header_branch
      %308 = sbr.rel (%p306) target = $region196
    $region193: #{_corrupt_device.1} parent=188 // loop_body
      %v312 = vld [vmem:[%s310] sm:%s303]
      %313 = vst [vmem:[%s311] sm:%s303] %v312
      %v314 = vld [vmem:[%s310 + $0x8] sm:%s303]
      %315 = vst [vmem:[%s311 + $0x8] sm:%s303] %v314
    $region194: #{_corrupt_device.1} parent=188 // loop_footer
      %s309 = sadd.s32 1, %s305
    $region195: #{_corrupt_device.1} parent=188 // loop_footer_branch
      %304 = sbr.rel target = $region191
    $region196: #{_corrupt_device.1} parent=188 // loop_exit
      _
  $region189: #{_corrupt_device.1} parent=0 // pred_fallthru
    _
  // Predicated region
  $region208: #{_corrupt_device.1} parent=0 // pred_check
    _
  $region209: #{_corrupt_device.1} parent=0 // pred_check_branch
    %334 = sbr.rel (0) target = $region211
  $region210: #{_corrupt_device.1} parent=0 // pred_region
    %335 = vsyncadd [#allocation2], 32
  $region211: #{_corrupt_device.1} parent=0 // pred_fallthru
    _
  %s336 = sadd.s32 %s15, 7
  %s337 = sld [smem:[#allocation4 + %s336]]
  %s338 = sshrl.u32 %s337, 3
  %s339 = sand.u32 %s337, 7
  %s340 = smul.u32 %s338, 16
  %s341 = sadd.s32 %s339, %s340
  %s342 = scalar_lea.vmem %s1, %s341
  %s343 = scalar_lea.vmem %s2, 7
  // Predicated region
  $region212: #{_corrupt_device.1} parent=0 // pred_check
    _
  $region213: #{_corrupt_device.1} parent=0 // pred_check_branch
    %345 = sbr.rel target = $region215
  $region214: #{_corrupt_device.1} parent=0 // pred_region
    // Predicated region
    $region227: #{_corrupt_device.1} parent=214 // pred_check
      _
    $region228: #{_corrupt_device.1} parent=214 // pred_check_branch
      %363 = sbr.rel (0) target = $region230
    $region229: #{_corrupt_device.1} parent=214 // pred_region
      %s365 = ssub.s32 2, 1
      loop: start=0, step=1, limit=1
      $region231: #{_corrupt_device.1} parent=229 // loop_pre_header
        _
      $region232: #{_corrupt_device.1} parent=229 // loop_header
        %s367 = sphi 0, %s371
        %p368 = scmp.ge.s32.totalorder %s367, 1
        %s372 = sphi %s342, %s342
        %s373 = sphi %s343, %s343
      $region233: #{_corrupt_device.1} parent=229 // loop_header_branch
        %370 = sbr.rel (%p368) target = $region237
      $region234: #{_corrupt_device.1} parent=229 // loop_body
        %v374 = vld [vmem:[%s372] sm:%s365]
        %375 = vst [vmem:[%s373] sm:%s365] %v374
        %v376 = vld [vmem:[%s372 + $0x8] sm:%s365]
        %377 = vst [vmem:[%s373 + $0x8] sm:%s365] %v376
      $region235: #{_corrupt_device.1} parent=229 // loop_footer
        %s371 = sadd.s32 1, %s367
      $region236: #{_corrupt_device.1} parent=229 // loop_footer_branch
        %366 = sbr.rel target = $region232
      $region237: #{_corrupt_device.1} parent=229 // loop_exit
        _
    $region230: #{_corrupt_device.1} parent=214 // pred_fallthru
      _
  $region215: #{_corrupt_device.1} parent=0 // pred_fallthru
    _
  // Predicated region
  $region216: #{_corrupt_device.1} parent=0 // pred_check
    _
  $region217: #{_corrupt_device.1} parent=0 // pred_check_branch
    %347 = sbr.rel (0) target = $region219
  $region218: #{_corrupt_device.1} parent=0 // pred_region
    %s349 = ssub.s32 2, 1
    loop: start=0, step=1, limit=1
    $region220: #{_corrupt_device.1} parent=218 // loop_pre_header
      _
    $region221: #{_corrupt_device.1} parent=218 // loop_header
      %s351 = sphi 0, %s355
      %p352 = scmp.ge.s32.totalorder %s351, 1
      %s356 = sphi %s342, %s342
      %s357 = sphi %s343, %s343
    $region222: #{_corrupt_device.1} parent=218 // loop_header_branch
      %354 = sbr.rel (%p352) target = $region226
    $region223: #{_corrupt_device.1} parent=218 // loop_body
      %v358 = vld [vmem:[%s356] sm:%s349]
      %359 = vst [vmem:[%s357] sm:%s349] %v358
      %v360 = vld [vmem:[%s356 + $0x8] sm:%s349]
      %361 = vst [vmem:[%s357 + $0x8] sm:%s349] %v360
    $region224: #{_corrupt_device.1} parent=218 // loop_footer
      %s355 = sadd.s32 1, %s351
    $region225: #{_corrupt_device.1} parent=218 // loop_footer_branch
      %350 = sbr.rel target = $region221
    $region226: #{_corrupt_device.1} parent=218 // loop_exit
      _
  $region219: #{_corrupt_device.1} parent=0 // pred_fallthru
    _
  // Predicated region
  $region238: #{_corrupt_device.1} parent=0 // pred_check
    _
  $region239: #{_corrupt_device.1} parent=0 // pred_check_branch
    %380 = sbr.rel (0) target = $region241
  $region240: #{_corrupt_device.1} parent=0 // pred_region
    %381 = vsyncadd [#allocation2], 32
  $region241: #{_corrupt_device.1} parent=0 // pred_fallthru
    _
  %s382 = smul.u32 8, 1
  %s383 = smul.u32 %s382, 2
  %s384 = sshll.u32 %s383, 4
  %385 = dma.done [#allocation2], %s384
  // Predicated region
  $region242: #{_corrupt_device.1} parent=0 // pred_check
    _
  $region243: #{_corrupt_device.1} parent=0 // pred_check_branch
    %387 = sbr.rel (0) target = $region245
  $region244: #{_corrupt_device.1} parent=0 // pred_region
    _
  $region245: #{_corrupt_device.1} parent=0 // pred_fallthru
    _
  // Predicated region
  $region246: #{_corrupt_device.1} parent=0 // pred_check
    _
  $region247: #{_corrupt_device.1} parent=0 // pred_check_branch
    %389 = sbr.rel (0) target = $region249
  $region248: #{_corrupt_device.1} parent=0 // pred_region
    _
  $region249: #{_corrupt_device.1} parent=0 // pred_fallthru
    _
  %390 = vsyncmov [#allocation2]
  %s391 = vpop.sfrf %390
  %p392 = scmp.eq.s32.totalorder %s391, 0
  %p393 = pneg %p392
  %395 = shalt.err (%p393)

</llo_original>
